<compile_context>
chip_gen: v7x
topology: tpu7x:2x2x1
jax: 0.10.0
libtpu: 0.0.40
codegen_flags: <defaults>
</compile_context>

<pallas_src>
import jax
import jax.numpy as jnp
from jax import lax
from jax.experimental import pallas as pl
from jax.experimental.pallas import tpu as pltpu


# Below this batch the fused XLA dot is faster than a pallas_call launch.
_PALLAS_MIN_BATCH = 4096

# Batch rows per grid step.  8192 x 32 f32 lane-pads to 8192 x 128 = 4 MiB per
# buffer; 2 input buffers + 2 output buffers + Wc ~= 8.7 MiB, safely inside
# even v5e's 16 MiB default scoped VMEM (and v7x's 32 MiB / 64 MiB physical).
_MAX_BLOCK_B = 8192


def _collapse_weights(weights, dtype):
    """Wc = Wn @ ... @ W1, shape (3, input_dim).  nn.Linear stores (out, in),
    so the chained product needs no transposes.  Runs once in the wrapper."""
    wc = weights[-1].astype(jnp.float32)
    for w in reversed(weights[:-1]):
        wc = jnp.dot(wc, w.astype(jnp.float32),
                     preferred_element_type=jnp.float32)
    return wc.astype(dtype)


def _kernel(x_ref, wc_ref, o_ref):
    """One MXU pass per batch tile, lane-dense transposed store.

    yT = Wc @ x^T : contract the last dim of both operands -> (3, block_b).
    No materialized transpose, no explicit upcast (MXU accumulates in f32 via
    preferred_element_type)."""
    yt = lax.dot_general(
        wc_ref[...], x_ref[...],
        dimension_numbers=(((1,), (1,)), ((), ())),
        preferred_element_type=jnp.float32,
    )
    o_ref[...] = yt.astype(o_ref.dtype)


def _xla_forward(x, wc):
    """Small-batch path: one fused XLA dot against the collapsed weight."""
    y = lax.dot_general(
        x, wc, dimension_numbers=(((1,), (1,)), ((), ())),
        preferred_element_type=jnp.float32,
    )
    return y.astype(x.dtype)


def _vmem_budget_bytes(block_b, in_dim, out_dim, itemsize):
    """Scoped-VMEM request: 2 double-buffered x tiles + 2 output tiles + Wc,
    counting (8, 128) tile padding of the minor dims, plus headroom."""
    lane, sub = 128, 8
    rup = lambda v, m: ((v + m - 1) // m) * m
    x_tile = rup(block_b, sub) * rup(in_dim, lane) * itemsize
    o_tile = rup(out_dim, sub) * rup(block_b, lane) * itemsize
    w_tile = rup(out_dim, sub) * rup(in_dim, lane) * itemsize
    need = 2 * (x_tile + o_tile) + 2 * w_tile + (4 << 20)
    # Stay within every generation's default-safe scoped budget (v7x: 32 MiB).
    return int(min(max(need, 16 << 20), 32 << 20))


def microbe_trend_predictor_forward(x, weights, *, force_pallas=True):
    """x: (B, input_dim).  weights: list of (out_i, in_i) arrays exactly as
    nn.Linear stores them (bias=False).  Returns (B, 3)."""
    b, in_dim = x.shape
    out_dim = weights[-1].shape[0]

    # Collapse the bias-free / activation-free chain once, outside the kernel.
    wc = _collapse_weights(weights, x.dtype)

    if not force_pallas and b < _PALLAS_MIN_BATCH:
        return _xla_forward(x, wc)

    # Tile the batch.  block_b is either the full batch (small B) or a
    # multiple of 128 (lane-aligned output store, sublane-aligned x load).
    block_b = b if b <= _MAX_BLOCK_B else _MAX_BLOCK_B
    grid = (pl.cdiv(b, block_b),)

    vmem = pltpu.MemorySpace.VMEM
    in_specs = [
        # x: (block_b, in_dim) batch tile streamed over the grid.
        pl.BlockSpec((block_b, in_dim), lambda i: (i, 0), memory_space=vmem),
        # Wc: full (3, in_dim) weight, resident across all grid steps.
        pl.BlockSpec((out_dim, in_dim), lambda i: (0, 0), memory_space=vmem),
    ]
    # Lane-dense transposed output: (3, B), tiled along the lane dimension.
    out_spec = pl.BlockSpec((out_dim, block_b), lambda i: (0, i),
                            memory_space=vmem)

    # Advisory cost hint for XLA scheduling around the custom call.
    flops = 2 * b * in_dim * out_dim
    bytes_accessed = (
        x.size * x.dtype.itemsize
        + wc.size * wc.dtype.itemsize
        + b * out_dim * x.dtype.itemsize
    )
    cost = pl.CostEstimate(flops=flops, transcendentals=0,
                           bytes_accessed=bytes_accessed)

    y_t = pl.pallas_call(
        _kernel,
        out_shape=jax.ShapeDtypeStruct((out_dim, b), x.dtype),
        grid=grid,
        in_specs=in_specs,
        out_specs=out_spec,
        compiler_params=pltpu.CompilerParams(
            dimension_semantics=("parallel",),
            vmem_limit_bytes=_vmem_budget_bytes(
                block_b, in_dim, out_dim, x.dtype.itemsize),
        ),
        cost_estimate=cost,
    )(x, wc)

    # Tiny (3, B) -> (B, 3) transpose back to the module's output layout.
    return y_t.T


def init_weights(num_layers, input_dim, key):
    """Deterministic synthetic init matching nn.Linear weight shapes
    (out_features, in_features), bias=False."""
    weights = []
    dim = input_dim
    keys = jax.random.split(key, num_layers)
    for i in range(num_layers - 1):
        size = round(dim / 2)
        bound = 1.0 / float(jnp.sqrt(dim))
        w = jax.random.uniform(keys[i], (size, dim), jnp.float32, -bound, bound)
        weights.append(w)
        dim = size
    bound = 1.0 / float(jnp.sqrt(dim))
    w_last = jax.random.uniform(keys[-1], (3, dim), jnp.float32, -bound, bound)
    weights.append(w_last)
    return weights


def reference_forward(x, weights):
    h = x
    for w in weights:
        h = h @ w.T  # nn.Linear(bias=False): y = x @ W^T, layer by layer
    return h


if __name__ == "__main__":
    # Small shapes consistent with the module: batch=8, input_dim=32,
    # num_layers=3  ->  32 -> 16 -> 8 -> 3.
    batch = 8
    input_dim = 32
    num_layers = 3

    key = jax.random.PRNGKey(0)
    kx, kw = jax.random.split(key)
    x = jax.random.normal(kx, (batch, input_dim), jnp.float32)
    weights = init_weights(num_layers, input_dim, kw)

    out = microbe_trend_predictor_forward(x, weights, force_pallas=True)
    out = jax.block_until_ready(out)

    ref = reference_forward(x, weights)
    assert out.shape == (batch, 3), out.shape
    # Collapsed-weight order changes fp32 rounding slightly; 1e-5 is ample.
    assert jnp.allclose(out, ref, atol=1e-5, rtol=1e-5), (
        float(jnp.max(jnp.abs(out - ref)))
    )

    print("KERNEL_OK")
</pallas_src>

<mosaic_0001>
module attributes {stable_mosaic.version = 11 : i64} {
  func.func @_kernel(%arg0: i32, %arg1: memref<8x32xf32, #tpu.memory_space<vmem>>, %arg2: memref<3x32xf32, #tpu.memory_space<vmem>>, %arg3: memref<3x8xf32, #tpu.memory_space<vmem>>) attributes {dimension_semantics = [#tpu.dimension_semantics<parallel>], iteration_bounds = array<i64: 1>, scalar_prefetch = 0 : i64, scratch_operands = 0 : i64, tpu.core_type = #tpu.core_type<tc>, window_params = [{transform_indices = @transform_0, window_bounds = array<i64: 8, 32>}, {pipeline_mode = #tpu.pipeline_mode<synchronous>, transform_indices = @transform_1, window_bounds = array<i64: 3, 32>}, {transform_indices = @transform_2, window_bounds = array<i64: 3, 8>}]} {
    %c0 = arith.constant 0 : index
    %c0_0 = arith.constant 0 : index
    %0 = vector.load %arg2[%c0, %c0_0] : memref<3x32xf32, #tpu.memory_space<vmem>>, vector<3x32xf32>
    %c0_1 = arith.constant 0 : index
    %c0_2 = arith.constant 0 : index
    %1 = vector.load %arg1[%c0_1, %c0_2] : memref<8x32xf32, #tpu.memory_space<vmem>>, vector<8x32xf32>
    %cst = arith.constant dense<0.000000e+00> : vector<3x8xf32>
    %2 = tpu.matmul %0, %1, %cst {dimension_numbers = #tpu.dot_dimension_numbers<[1], [1], [0], [0], [0, 0, 1, 0], [], []>} : vector<3x32xf32>, vector<8x32xf32>, vector<3x8xf32> -> vector<3x8xf32>
    %c0_3 = arith.constant 0 : index
    %c0_4 = arith.constant 0 : index
    %3 = vector.load %arg3[%c0_3, %c0_4] : memref<3x8xf32, #tpu.memory_space<vmem>>, vector<3x8xf32>
    tpu.vector_store %arg3[%c0_3, %c0_4], %2 {strides = array<i32>} : memref<3x8xf32, #tpu.memory_space<vmem>>, vector<3x8xf32>,
    return
  }
  func.func @transform_0(%arg0: i32) -> (i32, i32) {
    %c0_i32 = arith.constant 0 : i32
    %c0_i32_0 = arith.constant 0 : i32
    return %arg0, %c0_i32 : i32, i32
  }
  func.func @transform_1(%arg0: i32) -> (i32, i32) {
    %c0_i32 = arith.constant 0 : i32
    %c0_i32_0 = arith.constant 0 : i32
    %c0_i32_1 = arith.constant 0 : i32
    return %c0_i32, %c0_i32_0 : i32, i32
  }
  func.func @transform_2(%arg0: i32) -> (i32, i32) {
    %c0_i32 = arith.constant 0 : i32
    %c0_i32_0 = arith.constant 0 : i32
    return %c0_i32, %arg0 : i32, i32
  }
}

</mosaic_0001>

<llo_original>
// kernel: tpu_custom_call.1
$region0: #{tpu_custom_call.1}
  #allocation0 [shape = 'u32[]', space=smem, size = 0x4, offset = 0x4, fixed_abs, tag = 'smem constant byte address 0x4 - core index']
  #allocation1 [shape = 'u32[144,128]{1,0:T(1,128)}', space=vmem, size = 0x12000, scoped, tag = 'internal scratch']
  %s0 = inlined_call_operand.hbm [shape: f32[8,32], index: 0, kind: input, shape index: {}]
  %s1 = inlined_call_operand.hbm [shape: f32[3,32], index: 1, kind: input, shape index: {}]
  %s2 = inlined_call_operand.hbm [shape: f32[3,8], index: 2, kind: output, shape index: {}]
  %s3 = sld [smem:[#allocation0]]
  $region26: #{tpu_custom_call.1} parent=0
    _
  %s5 = ssub.s32 1, %s3
  %s6 = scalar_select 0, %s5, %s3
  $region1: #{tpu_custom_call.1} parent=0
    #allocation2 [shape = 'u8[4096]{0}', space=vmem, size = 0x1000, scoped, tag = 'input window, operand 0, single buffered']
    #allocation3 [shape = 's32[1]{0}', space=sflag, size = 0x4, scoped, tag = 'scoped memory for tpu_custom_call.1']
    #allocation4 [shape = 's32[1]{0}', space=sflag, size = 0x4, scoped, tag = 'scoped memory for tpu_custom_call.1']
    #allocation5 [shape = 'u8[2048]{0}', space=vmem, size = 0x800, scoped, tag = 'input window, operand 1, single buffered']
    #allocation6 [shape = 's32[1]{0}', space=sflag, size = 0x4, scoped, tag = 'scoped memory for tpu_custom_call.1']
    #allocation7 [shape = 'u8[2048]{0}', space=vmem, size = 0x800, scoped, tag = 'output window, operand 0, single buffered']
    %7 = vsyncpa [#allocation3], 0
    %8 = vsyncpa [#allocation6], 0
    %9 = vsyncpa [#allocation4], 0
    // Predicated region
    $region2: #{tpu_custom_call.1} parent=1 // pred_check
      _
    $region3: #{tpu_custom_call.1} parent=1 // pred_check_branch
      %11 = sbr.rel (0) target = $region5
    $region4: #{tpu_custom_call.1} parent=1 // pred_region
      %s13 = ssub.s32 128, 128
      %14 = vsyncadd [#allocation3], %s13
      %s16 = sshll.u32 [#allocation2], 4
      %s17 = int_to_ptr.vmem [resolvable:$true] %s16
      %19 = dma.hbm_to_vmem [thread:$0]  %s0, 128, %s17, [#allocation3]
    $region5: #{tpu_custom_call.1} parent=1 // pred_fallthru
      _
    // Predicated region
    $region6: #{tpu_custom_call.1} parent=1 // pred_check
      _
    $region7: #{tpu_custom_call.1} parent=1 // pred_check_branch
      %21 = sbr.rel (0) target = $region9
    $region8: #{tpu_custom_call.1} parent=1 // pred_region
      %s23 = ssub.s32 64, 64
      %24 = vsyncadd [#allocation6], %s23
      %s26 = sshll.u32 [#allocation5], 4
      %s27 = int_to_ptr.vmem [resolvable:$true] %s26
      %29 = dma.hbm_to_vmem [thread:$0]  %s1, 64, %s27, [#allocation6]
    $region9: #{tpu_custom_call.1} parent=1 // pred_fallthru
      _
    // Predicated region
    $region10: #{tpu_custom_call.1} parent=1 // pred_check
      _
    $region11: #{tpu_custom_call.1} parent=1 // pred_check_branch
      %31 = sbr.rel (0) target = $region13
    $region12: #{tpu_custom_call.1} parent=1 // pred_region
      %32 = dma.done [#allocation3], 128
    $region13: #{tpu_custom_call.1} parent=1 // pred_fallthru
      _
    // Predicated region
    $region14: #{tpu_custom_call.1} parent=1 // pred_check
      _
    $region15: #{tpu_custom_call.1} parent=1 // pred_check_branch
      %34 = sbr.rel (0) target = $region17
    $region16: #{tpu_custom_call.1} parent=1 // pred_region
      %35 = dma.done [#allocation6], 64
    $region17: #{tpu_custom_call.1} parent=1 // pred_fallthru
      _
    %v36 = vld [vmem:[#allocation5] sm:$0x7]
    %v37 = vld [vmem:[#allocation2] sm:$0xff]
    %vm38 = vcmask 261120
    %v40 = vsel %vm38, %v36, 0
    %v43 = vsel %vm38, %v37, 0
    %45 = vmatprep.subr.mxu0 0.0
    %46 = vmatpush1.xpose.msra.mxu0 %v43
    %47 = vmatprep.subr.mxu0 0.0
    %48 = vmatpush1.xpose.msra.mxu0 0.0
    %49 = vmatprep.subr.mxu0 0.0
    %50 = vmatpush1.xpose.msra.mxu0 0.0
    %51 = vmatprep.subr.mxu0 0.0
    %52 = vmatpush1.xpose.msra.mxu0 0.0
    %53 = vmatprep.subr.mxu0 0.0
    %54 = vmatpush1.xpose.msra.mxu0 0.0
    %55 = vmatprep.subr.mxu0 0.0
    %56 = vmatpush1.xpose.msra.mxu0 0.0
    %57 = vmatprep.subr.mxu0 0.0
    %58 = vmatpush1.xpose.msra.mxu0 0.0
    %59 = vmatprep.subr.mxu0 0.0
    %60 = vmatpush1.xpose.msra.mxu0 0.0
    %61 = vmatprep.subr.mxu0 0.0
    %62 = vmatpush1.xpose.msra.mxu0 0.0
    %63 = vmatprep.subr.mxu0 0.0
    %64 = vmatpush1.xpose.msra.mxu0 0.0
    %65 = vmatprep.subr.mxu0 0.0
    %66 = vmatpush1.xpose.msra.mxu0 0.0
    %67 = vmatprep.subr.mxu0 0.0
    %68 = vmatpush1.xpose.msra.mxu0 0.0
    %69 = vmatprep.subr.mxu0 0.0
    %70 = vmatpush1.xpose.msra.mxu0 0.0
    %71 = vmatprep.subr.mxu0 0.0
    %72 = vmatpush1.xpose.msra.mxu0 0.0
    %73 = vmatprep.subr.mxu0 0.0
    %74 = vmatpush1.xpose.msra.mxu0 0.0
    %75 = vmatprep.subr.mxu0 0.0
    %76 = vmatpush1.xpose.msra.mxu0 0.0
    %77 = vmatprep.subr.mxu0 0.0
    %78 = vmatpush1.xpose.msra.mxu0 0.0
    %79 = vmatprep.subr.mxu0 0.0
    %80 = vmatpush1.xpose.msra.mxu0 0.0
    %81 = vmatprep.subr.mxu0 0.0
    %82 = vmatpush1.xpose.msra.mxu0 0.0
    %83 = vmatprep.subr.mxu0 0.0
    %84 = vmatpush1.xpose.msra.mxu0 0.0
    %85 = vmatprep.subr.mxu0 0.0
    %86 = vmatpush1.xpose.msra.mxu0 0.0
    %87 = vmatprep.subr.mxu0 0.0
    %88 = vmatpush1.xpose.msra.mxu0 0.0
    %89 = vmatprep.subr.mxu0 0.0
    %90 = vmatpush1.xpose.msra.mxu0 0.0
    %91 = vmatprep.subr.mxu0 0.0
    %92 = vmatpush1.xpose.msra.mxu0 0.0
    %93 = vmatprep.subr.mxu0 0.0
    %94 = vmatpush1.xpose.msra.mxu0 0.0
    %95 = vmatprep.subr.mxu0 0.0
    %96 = vmatpush1.xpose.msra.mxu0 0.0
    %97 = vmatprep.subr.mxu0 0.0
    %98 = vmatpush1.xpose.msra.mxu0 0.0
    %99 = vmatprep.subr.mxu0 0.0
    %100 = vmatpush1.xpose.msra.mxu0 0.0
    %101 = vmatprep.subr.mxu0 0.0
    %102 = vmatpush1.xpose.msra.mxu0 0.0
    %103 = vmatprep.subr.mxu0 0.0
    %104 = vmatpush1.xpose.msra.mxu0 0.0
    %105 = vmatprep.subr.mxu0 0.0
    %106 = vmatpush1.xpose.msra.mxu0 0.0
    %107 = vmatprep.subr.mxu0 0.0
    %108 = vmatpush1.xpose.msra.mxu0 0.0
    %109 = vmatprep.mubr.f32.mxu0 0.0
    %110 = vmatmul.mubr.f32.gmra.mrb[0].mxu0 %v40
    %v111 = vpop.f32.mrb[0].mxu0
    %v112 = vadd.f32 0.0, %v111
    %v113 = vpop.f32.mrb[0].mxu0
    %114 = vdwg.mxu0
    %vm115 = vcmask 59392
    %116 = vst.msk [vmem:[#allocation7] sm:$0x7] %vm115, %v112
    // Predicated region
    $region18: #{tpu_custom_call.1} parent=1 // pred_check
      _
    $region19: #{tpu_custom_call.1} parent=1 // pred_check_branch
      %118 = sbr.rel (0) target = $region21
    $region20: #{tpu_custom_call.1} parent=1 // pred_region
      %s120 = ssub.s32 64, 64
      %121 = vsyncadd [#allocation4], %s120
      %s123 = sshll.u32 [#allocation7], 4
      %s124 = int_to_ptr.vmem [resolvable:$true] %s123
      %126 = dma.vmem_to_hbm [thread:$0]  %s124, 64, %s2, [#allocation4]
    $region21: #{tpu_custom_call.1} parent=1 // pred_fallthru
      _
    // Predicated region
    $region22: #{tpu_custom_call.1} parent=1 // pred_check
      _
    $region23: #{tpu_custom_call.1} parent=1 // pred_check_branch
      %128 = sbr.rel (0) target = $region25
    $region24: #{tpu_custom_call.1} parent=1 // pred_region
      %129 = dma.done [#allocation4], 64
    $region25: #{tpu_custom_call.1} parent=1 // pred_fallthru
      _
    %130 = vsyncpa [#allocation3], 1
    %131 = vsyncpa [#allocation6], 1
    %132 = vsyncpa [#allocation4], 1

</llo_original>
